<compile_context>
chip_gen: v6e
topology: v6e:2x2x1
jax: 0.10.0
libtpu: 0.0.40
codegen_flags: <defaults>
</compile_context>

<pallas_src>
import jax
import jax.numpy as jnp
import numpy as np
from jax import lax
from jax.experimental import pallas as pl
from jax.experimental.pallas import tpu as pltpu

BN_EPS = 1e-5

# pltpu.roll follows jnp.roll semantics (positive shift moves element i to
# index i+shift).  main() probes this once on the real backend so a convention
# change in a future jax/libtpu release becomes a loud failure instead of
# silently mis-shifted conv taps.
_ROLL_CONVENTION = {"numpy": True}


def _probe_roll_convention():
    """One-off check that pltpu.roll matches jnp.roll on this backend."""
    def k(x_ref, o_ref):
        o_ref[...] = pltpu.roll(x_ref[...], 1, 1)

    x = jnp.arange(8 * 128, dtype=jnp.float32).reshape(8, 128)
    y = np.asarray(
        pl.pallas_call(k, out_shape=jax.ShapeDtypeStruct((8, 128), jnp.float32))(x))
    if y[0, 1] == 0.0:        # out[0,1] == x[0,0] -> jnp.roll convention
        return True
    if y[0, 1] == 2.0:        # out[0,1] == x[0,2] -> flipped convention
        return False
    raise RuntimeError("unexpected pltpu.roll semantics")


def _lane_roll(v, delta, lanes):
    """out[..., i] = v[..., (i + delta) % lanes] for a static integer delta."""
    if delta % lanes == 0:
        return v
    if _ROLL_CONVENTION["numpy"]:
        shift = (-delta) % lanes
    else:                      # pragma: no cover - only if the backend flips
        shift = delta % lanes
    return pltpu.roll(v, shift, v.ndim - 1)


def _conv_taps(K, dilation, H, W):
    """Surviving taps of a KxK dilated 'same' conv: (tap_index, oy, ox)."""
    off = K // 2
    taps = []
    for kh in range(K):
        for kw in range(K):
            oy = (kh - off) * dilation
            ox = (kw - off) * dilation
            if abs(oy) > H - 1 or abs(ox) > W - 1:
                continue  # tap never overlaps the image -> contributes zeros
            taps.append((kh * K + kw, oy, ox))
    return taps


def _make_fused_kernel(W, lanes, gpad, x_rows, c_total_pad, init_taps, dense_taps):
    f32 = jnp.float32

    def kernel(x_ref, masks_ref, init_w_ref, init_b_ref,
               bn_scale_ref, bn_shift_ref, dense_w_ref,
               logits_w_ref, logits_b_ref, o_ref, feat_ref):

        def shifted(v, oy, ox, mrow):
            # out[:, i] = v[:, i + oy*W + ox] with "same" zero padding.  The
            # mask zeroes every position whose tap falls outside its own image
            # (this also covers roll wrap-around and cross-image bleed), so the
            # ox == 0 taps still need it in the roll formulation.
            if (oy, ox) == (0, 0):
                return v
            rolled = _lane_roll(v, oy * W + ox, lanes)
            return rolled * masks_ref[mrow:mrow + 1, :]

        # ---- raw image -> rows [0, x_rows); padding rows written to 0 every
        # step (no reliance on first-iteration init: with a "parallel" batch
        # axis each core's first step is not necessarily program_id == 0). ----
        x = x_ref[...]                                      # (1, lanes) f32
        feat_ref[0:x_rows, :] = jnp.zeros((x_rows, lanes), f32)
        feat_ref[0:1, :] = x

        # ---- initial 5x5 conv (Cin = 1): VPU outer-product accumulate -------
        acc0 = jnp.zeros((gpad, lanes), f32)
        for t, oy, ox, mrow in init_taps:
            acc0 = acc0 + init_w_ref[t] * shifted(x, oy, ox, mrow)
        feat_ref[x_rows:x_rows + gpad, :] = acc0 + init_b_ref[...]

        # ---- dense layers: eval-BN + ReLU + dilated 3x3, concat = row slab ---
        for n, taps in enumerate(dense_taps):
            cin_pad = x_rows + gpad * (n + 1)               # rows written so far
            xin = feat_ref[0:cin_pad, :]                    # f32 (cin_pad, lanes)
            scale = bn_scale_ref[n, 0:cin_pad, :]           # (cin_pad, 1) f32
            shift = bn_shift_ref[n, 0:cin_pad, :]
            y = jnp.maximum(xin * scale + shift, 0.0).astype(jnp.bfloat16)

            ntap = len(taps)
            # Weights read right before their single fused matmul (M = ntap*gpad).
            w = dense_w_ref[n, 0:ntap * gpad, 0:cin_pad]    # bf16
            z = jnp.dot(w, y, preferred_element_type=f32)   # (ntap*gpad, lanes)

            acc = None
            for i, (_, oy, ox, mrow) in enumerate(taps):
                slab = shifted(z[i * gpad:(i + 1) * gpad, :], oy, ox, mrow)
                acc = slab if acc is None else acc + slab
            feat_ref[cin_pad:cin_pad + gpad, :] = acc       # padded rows are 0

        # ---- final 1x1 logits conv over the whole resident feature map -------
        full = feat_ref[0:c_total_pad, :].astype(jnp.bfloat16)
        logits = jnp.dot(logits_w_ref[...], full, preferred_element_type=f32)
        o_ref[...] = logits + logits_b_ref[...]

    return kernel


# ----------------------------- parameters ------------------------------------

def init_params(key, image_channels=1, num_init_features=12, growth_rate=12,
                layers=8, classes=2, dilated=True):
    def conv_w(k, kk, cin, cout):
        bound = 1.0 / np.sqrt(cin * kk * kk)
        return jax.random.uniform(k, (kk * kk, cin, cout), jnp.float32, -bound, bound)

    params = {}
    k_init_w, k_init_b, k_rest = jax.random.split(key, 3)
    b0 = 1.0 / np.sqrt(image_channels * 25)
    params['init_w'] = conv_w(k_init_w, 5, image_channels, num_init_features)
    params['init_b'] = jax.random.uniform(k_init_b, (num_init_features,),
                                          jnp.float32, -b0, b0)

    dense = []
    nfeat = image_channels + num_init_features          # 1 + 12 = 13
    keys = jax.random.split(k_rest, layers + 1)
    for n in range(layers):
        kg, kb, km, kv, kw = jax.random.split(keys[n], 5)
        dense.append(dict(
            gamma=jax.random.uniform(kg, (nfeat,), jnp.float32, 0.8, 1.2),
            beta=jax.random.uniform(kb, (nfeat,), jnp.float32, -0.1, 0.1),
            mean=0.1 * jax.random.normal(km, (nfeat,), jnp.float32),
            var=jax.random.uniform(kv, (nfeat,), jnp.float32, 0.5, 1.5),
            w=conv_w(kw, 3, nfeat, growth_rate),
        ))
        nfeat += growth_rate
    params['dense'] = dense

    kw, kb = jax.random.split(keys[layers], 2)
    b1 = 1.0 / np.sqrt(nfeat)
    params['logits_w'] = conv_w(kw, 1, nfeat, classes)   # nfeat = 109
    params['logits_b'] = jax.random.uniform(kb, (classes,), jnp.float32, -b1, b1)
    return params


# ----------------------------- Pallas forward --------------------------------

def _images_per_block(N):
    # Pack images along the lane axis to amortize per-step pipeline overhead
    # and constant weight blocks, but keep >= 2 grid steps so a v7x chip can
    # split the "parallel" batch axis over both TensorCores, and cap the block
    # at 2 images so the fused (144, lanes) matmul result stays in vregs.
    for ipb in (2, 1):
        if N % ipb == 0 and N // ipb >= 2:
            return ipb
    return 1


def dilated_densenet_forward(params, x_nchw, dilated=True):
    N, Cimg, H, W = x_nchw.shape
    HW = H * W
    growth = params['dense'][0]['w'].shape[-1]
    classes = params['logits_w'].shape[-1]
    cins = [layer['w'].shape[1] for layer in params['dense']]
    L = len(cins)
    c_total = cins[-1] + growth
    assert Cimg == 1 and params['init_w'].shape[1] == 1
    assert params['logits_w'].shape[1] == c_total
    assert cins[0] == Cimg + growth
    assert all(b - a == growth for a, b in zip(cins, cins[1:]))

    # Sublane-aligned channel layout (review item 3): raw image -> 8 rows, each
    # growth group -> gpad rows.  All row offsets / slab heights are then
    # multiples of 8, so reads, writes and matmul slabs never need retiling.
    x_rows = 8
    gpad = -(-growth // 8) * 8                           # 12 -> 16
    c_total_pad = x_rows + (L + 1) * gpad                # 8 + 9*16 = 152
    cmax_pad = x_rows + L * gpad                         # widest dense input

    ipb = _images_per_block(N)
    nb = N // ipb
    lanes = ipb * HW

    # ---- static conv plan: surviving taps + host-precomputed validity masks --
    mask_rows = {}
    mask_list = []

    def mask_id(oy, ox):
        if (oy, ox) == (0, 0):
            return -1
        if (oy, ox) not in mask_rows:
            m = np.zeros((H, W), np.float32)
            m[max(0, -oy):min(H, H - oy), max(0, -ox):min(W, W - ox)] = 1.0
            mask_rows[(oy, ox)] = len(mask_list)
            mask_list.append(np.tile(m.reshape(HW), ipb))   # tiled per image
        return mask_rows[(oy, ox)]

    init_taps = [(t, oy, ox, mask_id(oy, ox)) for t, oy, ox in _conv_taps(5, 1, H, W)]
    dense_taps = []
    dil = 1
    for _ in range(L):
        dense_taps.append([(t, oy, ox, mask_id(oy, ox))
                           for t, oy, ox in _conv_taps(3, dil if dilated else 1, H, W)])
        if dilated:
            dil *= 2
    masks = (jnp.asarray(np.stack(mask_list, axis=0)) if mask_list
             else jnp.zeros((1, lanes), jnp.float32))
    n_masks = masks.shape[0]

    # ---- pack parameters into the padded channel-major layout ----------------
    f32 = jnp.float32

    def pad_dim(a, axis, target):
        extra = target - a.shape[axis]
        if extra == 0:
            return a
        shp = list(a.shape)
        shp[axis] = extra
        return jnp.concatenate([a, jnp.zeros(shp, a.dtype)], axis=axis)

    def to_padded_rows(a, n_groups):
        """Map last-axis logical channels [x | g0 | g1 ...] to padded rows."""
        pieces = [pad_dim(a[..., :Cimg], -1, x_rows)]
        for g in range(n_groups):
            s = Cimg + g * growth
            pieces.append(pad_dim(a[..., s:s + growth], -1, gpad))
        return jnp.concatenate(pieces, axis=-1)

    x_cm = x_nchw.astype(f32).reshape(nb, 1, lanes)

    init_w = pad_dim(jnp.transpose(params['init_w'], (0, 2, 1)).astype(f32), 1, gpad)
    init_b = pad_dim(params['init_b'].astype(f32).reshape(growth, 1), 0, gpad)

    bn_scale_l, bn_shift_l, dense_w_l = [], [], []
    for n, layer in enumerate(params['dense']):
        scale = (layer['gamma'] / jnp.sqrt(layer['var'] + BN_EPS)).astype(f32)
        shift = (layer['beta'] - layer['mean'] * scale).astype(f32)
        bn_scale_l.append(pad_dim(to_padded_rows(scale, n + 1), -1, cmax_pad)
                          .reshape(cmax_pad, 1))
        bn_shift_l.append(pad_dim(to_padded_rows(shift, n + 1), -1, cmax_pad)
                          .reshape(cmax_pad, 1))

        blocks = []
        for t, _, _, _ in dense_taps[n]:
            wt = jnp.transpose(layer['w'][t], (1, 0)).astype(f32)   # (growth, cin)
            wt = pad_dim(to_padded_rows(wt, n + 1), 0, gpad)        # (gpad, cin_pad)
            blocks.append(wt)
        wl = jnp.concatenate(blocks, axis=0)                        # (ntap*gpad, cin_pad)
        dense_w_l.append(pad_dim(pad_dim(wl, 0, 9 * gpad), 1, cmax_pad))

    bn_scale = jnp.stack(bn_scale_l, axis=0)                        # (L, cmax_pad, 1)
    bn_shift = jnp.stack(bn_shift_l, axis=0)
    dense_w = jnp.stack(dense_w_l, axis=0).astype(jnp.bfloat16)     # (L, 9*gpad, cmax_pad)
    logits_w = to_padded_rows(
        jnp.transpose(params['logits_w'][0], (1, 0)).astype(f32),
        L + 1).astype(jnp.bfloat16)                                 # (classes, c_total_pad)
    logits_b = params['logits_b'].astype(f32).reshape(classes, 1)

    kernel = _make_fused_kernel(W, lanes, gpad, x_rows, c_total_pad,
                                init_taps, dense_taps)

    out = pl.pallas_call(
        kernel,
        out_shape=jax.ShapeDtypeStruct((nb, classes, lanes), jnp.float32),
        grid_spec=pltpu.PrefetchScalarGridSpec(
            num_scalar_prefetch=0,
            grid=(nb,),                                   # one image block per step
            in_specs=[
                pl.BlockSpec((None, 1, lanes), lambda b: (b, 0, 0)),
                pl.BlockSpec((n_masks, lanes), lambda b: (0, 0)),
                pl.BlockSpec((25, gpad, 1), lambda b: (0, 0, 0)),
                pl.BlockSpec((gpad, 1), lambda b: (0, 0)),
                pl.BlockSpec((L, cmax_pad, 1), lambda b: (0, 0, 0)),
                pl.BlockSpec((L, cmax_pad, 1), lambda b: (0, 0, 0)),
                pl.BlockSpec((L, 9 * gpad, cmax_pad), lambda b: (0, 0, 0)),
                pl.BlockSpec((classes, c_total_pad), lambda b: (0, 0)),
                pl.BlockSpec((classes, 1), lambda b: (0, 0)),
            ],
            out_specs=pl.BlockSpec((None, classes, lanes), lambda b: (b, 0, 0)),
            scratch_shapes=[
                pltpu.VMEM((c_total_pad, lanes), jnp.float32),  # resident features
            ],
        ),
        compiler_params=pltpu.CompilerParams(
            dimension_semantics=("parallel",),            # batch blocks -> 2 TCs on v7x
        ),
    )(x_cm, masks, init_w, init_b, bn_scale, bn_shift, dense_w, logits_w, logits_b)

    out = out.reshape(nb, classes, ipb, HW).transpose(0, 2, 1, 3)
    return out.reshape(N, classes, H, W)                  # NCHW


# ----------------------------- pure-JAX reference -----------------------------

def _conv_ref(x, w, bias, K, dilation):
    whwio = w.reshape(K, K, w.shape[1], w.shape[2])
    pad = dilation * (K // 2)
    out = lax.conv_general_dilated(
        x, whwio, window_strides=(1, 1), padding=((pad, pad), (pad, pad)),
        rhs_dilation=(dilation, dilation),
        dimension_numbers=('NHWC', 'HWIO', 'NHWC'),
        precision=lax.Precision.HIGHEST)
    return out if bias is None else out + bias


def dilated_densenet_reference(params, x_nchw):
    x = jnp.transpose(x_nchw, (0, 2, 3, 1)).astype(jnp.float32)
    out = _conv_ref(x, params['init_w'], params['init_b'], 5, 1)
    feat = jnp.concatenate([x, out], axis=-1)
    dilation = 1
    for layer in params['dense']:
        scale = layer['gamma'] / jnp.sqrt(layer['var'] + BN_EPS)
        shift = layer['beta'] - layer['mean'] * scale
        y = jnp.maximum(feat * scale + shift, 0.0)
        feat = jnp.concatenate([feat, _conv_ref(y, layer['w'], None, 3, dilation)],
                               axis=-1)
        dilation *= 2
    out = _conv_ref(feat, params['logits_w'], params['logits_b'], 1, 1)
    return jnp.transpose(out, (0, 3, 1, 2))


# ----------------------------------- main -------------------------------------

if __name__ == "__main__":
    _ROLL_CONVENTION["numpy"] = _probe_roll_convention()

    key = jax.random.PRNGKey(0)
    kp, kx = jax.random.split(key)
    params = init_params(kp)                                 # image_channels=1, classes=2
    x = jax.random.normal(kx, (2, 1, 16, 16), jnp.float32)   # NCHW input

    fwd = jax.jit(dilated_densenet_forward)
    out = jax.block_until_ready(fwd(params, x))

    assert out.shape == (2, 2, 16, 16), out.shape
    ref = dilated_densenet_reference(params, x)
    # Kernel uses bf16 MXU operands with f32 accumulation; the reference uses
    # Precision.HIGHEST, so allow a few 1e-2 of slack.
    np.testing.assert_allclose(np.asarray(out), np.asarray(ref), rtol=5e-2, atol=5e-2)
    print("KERNEL_OK")
</pallas_src>

<mosaic_0001>
module attributes {stable_mosaic.version = 11 : i64} {
  func.func @k(%arg0: memref<8x128xf32, #tpu.memory_space<vmem>>, %arg1: memref<8x128xf32, #tpu.memory_space<vmem>>) attributes {dimension_semantics = [], scalar_prefetch = 0 : i64, scratch_operands = 0 : i64, tpu.core_type = #tpu.core_type<tc>} {
    %c0 = arith.constant 0 : index
    %c0_0 = arith.constant 0 : index
    %0 = vector.load %arg0[%c0, %c0_0] : memref<8x128xf32, #tpu.memory_space<vmem>>, vector<8x128xf32>
    %c1_i32 = arith.constant 1 : i32
    %1 = tpu.dynamic_rotate %0 by %c1_i32 dim 1 : vector<8x128xf32>, i32 -> vector<8x128xf32>
    %c0_1 = arith.constant 0 : index
    %c0_2 = arith.constant 0 : index
    %2 = vector.load %arg1[%c0_1, %c0_2] : memref<8x128xf32, #tpu.memory_space<vmem>>, vector<8x128xf32>
    tpu.vector_store %arg1[%c0_1, %c0_2], %1 {strides = array<i32>} : memref<8x128xf32, #tpu.memory_space<vmem>>, vector<8x128xf32>,
    return
  }
}

</mosaic_0001>

<llo_original>
// kernel: tpu_custom_call.1
$region0: #{tpu_custom_call.1}
  #allocation0 [shape = 'u32[]', space=smem, size = 0x4, offset = 0x4, fixed_abs, tag = 'smem constant byte address 0x4 - core index']
  #allocation1 [shape = 'u32[144,128]{1,0:T(1,128)}', space=vmem, size = 0x12000, scoped, tag = 'internal scratch']
  %s0 = inlined_call_operand.hbm [shape: f32[8,128], index: 0, kind: input, shape index: {}]
  %s1 = inlined_call_operand.hbm [shape: f32[8,128], index: 1, kind: output, shape index: {}]
  %s2 = sld [smem:[#allocation0]]
  $region18: #{tpu_custom_call.1} parent=0
    _
  %s4 = ssub.s32 1, %s2
  %s5 = scalar_select 0, %s4, %s2
  $region1: #{tpu_custom_call.1} parent=0
    #allocation2 [shape = 'u8[4096]{0}', space=vmem, size = 0x1000, scoped, tag = 'input window, operand 0, single buffered']
    #allocation3 [shape = 's32[1]{0}', space=sflag, size = 0x4, scoped, tag = 'scoped memory for tpu_custom_call.1']
    #allocation4 [shape = 's32[1]{0}', space=sflag, size = 0x4, scoped, tag = 'scoped memory for tpu_custom_call.1']
    #allocation5 [shape = 'u8[4096]{0}', space=vmem, size = 0x1000, scoped, tag = 'output window, operand 0, single buffered']
    %6 = vsyncpa [#allocation3], 0
    %7 = vsyncpa [#allocation4], 0
    // Predicated region
    $region2: #{tpu_custom_call.1} parent=1 // pred_check
      _
    $region3: #{tpu_custom_call.1} parent=1 // pred_check_branch
      %9 = sbr.rel (0) target = $region5
    $region4: #{tpu_custom_call.1} parent=1 // pred_region
      %s11 = ssub.s32 128, 128
      %12 = vsyncadd [#allocation3], %s11
      %s14 = sshll.u32 [#allocation2], 4
      %s15 = int_to_ptr.vmem [resolvable:$true] %s14
      %17 = dma.hbm_to_vmem [thread:$0]  %s0, 128, %s15, [#allocation3]
    $region5: #{tpu_custom_call.1} parent=1 // pred_fallthru
      _
    // Predicated region
    $region6: #{tpu_custom_call.1} parent=1 // pred_check
      _
    $region7: #{tpu_custom_call.1} parent=1 // pred_check_branch
      %19 = sbr.rel (0) target = $region9
    $region8: #{tpu_custom_call.1} parent=1 // pred_region
      %20 = dma.done [#allocation3], 128
    $region9: #{tpu_custom_call.1} parent=1 // pred_fallthru
      _
    %v21 = vld [vmem:[#allocation2] sm:$0xff]
    %22 = vrot.lane.b32.xlu0 %v21, 1
    %v23 = vpop.permute.xlu0 %22
    %24 = vst [vmem:[#allocation5] sm:$0xff] %v23
    // Predicated region
    $region10: #{tpu_custom_call.1} parent=1 // pred_check
      _
    $region11: #{tpu_custom_call.1} parent=1 // pred_check_branch
      %26 = sbr.rel (0) target = $region13
    $region12: #{tpu_custom_call.1} parent=1 // pred_region
      %s28 = ssub.s32 128, 128
      %29 = vsyncadd [#allocation4], %s28
      %s31 = sshll.u32 [#allocation5], 4
      %s32 = int_to_ptr.vmem [resolvable:$true] %s31
      %34 = dma.vmem_to_hbm [thread:$0]  %s32, 128, %s1, [#allocation4]
    $region13: #{tpu_custom_call.1} parent=1 // pred_fallthru
      _
    // Predicated region
    $region14: #{tpu_custom_call.1} parent=1 // pred_check
      _
    $region15: #{tpu_custom_call.1} parent=1 // pred_check_branch
      %36 = sbr.rel (0) target = $region17
    $region16: #{tpu_custom_call.1} parent=1 // pred_region
      %37 = dma.done [#allocation4], 128
    $region17: #{tpu_custom_call.1} parent=1 // pred_fallthru
      _
    %38 = vsyncpa [#allocation3], 1
    %39 = vsyncpa [#allocation4], 1

</llo_original>
